<compile_context>
chip_gen: v5e
topology: v5e:2x2
jax: 0.10.0
libtpu: 0.0.40
codegen_flags: <defaults>
</compile_context>

<pallas_src>
import jax
import jax.numpy as jnp
from jax.experimental import pallas as pl
from jax.experimental.pallas import tpu as pltpu


def _round_up(x, m):
    return (x + m - 1) // m * m


# ---------------- Pass 1: conv GEMM + per-channel sum / sumsq -----------------
def conv_stats_kernel(p_ref, w_ref, conv_ref, sum_ref, sq_ref):
    # MXU matmul: bf16 inputs, f32 accumulation.
    x = jnp.dot(p_ref[...], w_ref[...], preferred_element_type=jnp.float32)
    conv_ref[...] = x

    @pl.when(pl.program_id(0) == 0)
    def _init():
        sum_ref[...] = jnp.zeros_like(sum_ref)
        sq_ref[...] = jnp.zeros_like(sq_ref)

    # Per-channel reductions over this M-tile, accumulated across the grid in
    # resident output blocks (same block index every step -> written back once).
    # Zero-padded rows contribute nothing.
    sum_ref[...] += jnp.sum(x, axis=0, keepdims=True)
    sq_ref[...] += jnp.sum(x * x, axis=0, keepdims=True)


# ---------------- Pass 2: folded BatchNorm affine + LeakyReLU -----------------
def bn_lrelu_kernel(x_ref, scale_ref, shift_ref, o_ref):
    y = x_ref[...] * scale_ref[...] + shift_ref[...]
    o_ref[...] = jnp.where(y > 0, y, jnp.float32(0.1) * y)


def _im2col(x_nchw, kh, kw, stride, pad):
    """(N, C, H, W) -> patches (N*OH*OW, C*KH*KW) plus (OH, OW)."""
    n, c, h, w = x_nchw.shape
    xp = jnp.pad(x_nchw, ((0, 0), (0, 0), (pad, pad), (pad, pad)))
    oh = (h + 2 * pad - kh) // stride + 1
    ow = (w + 2 * pad - kw) // stride + 1
    cols = []
    for i in range(kh):
        for j in range(kw):
            cols.append(xp[:, :, i:i + stride * oh:stride, j:j + stride * ow:stride])
    p = jnp.stack(cols, axis=0)                # (KH*KW, N, C, OH, OW)
    p = jnp.transpose(p, (1, 3, 4, 2, 0))      # (N, OH, OW, C, KH*KW)
    return p.reshape(n * oh * ow, c * kh * kw), oh, ow


def cnn_block(x_nchw, weight, gamma, beta, *, stride=1, padding=1, tm=256):
    """PyTorch-layout CNNBlock forward. x: (N,Cin,H,W), weight: (Cout,Cin,KH,KW)."""
    n, c_in, h, w = x_nchw.shape
    c_out, _, kh, kw = weight.shape

    # bf16 streams into the MXU (f32 accumulation inside the kernel).
    x_b = x_nchw.astype(jnp.bfloat16)
    w_b = weight.astype(jnp.bfloat16)

    # TODO(synk): fuse im2col into pass 1 (shifted-window matmuls over an NHWC
    # input kept in HBM) to remove the KH*KW-fold HBM inflation of `patches`.
    patches, oh, ow = _im2col(x_b, kh, kw, stride, padding)
    m_true, k_true = patches.shape

    # Lane/sublane-dense padding: Cout -> x128 lanes, K -> x8 sublanes, M -> x tile.
    c_pad = _round_up(c_out, 128)
    k_pad = _round_up(k_true, 8)
    tm_eff = min(_round_up(tm, 8), _round_up(m_true, 8))
    m_pad = _round_up(m_true, tm_eff)
    num_tiles = m_pad // tm_eff

    patches_p = jnp.pad(patches, ((0, m_pad - m_true), (0, k_pad - k_true)))
    # (Cout, Cin, KH, KW) -> (K, Cout), matching the (c, kh, kw) flatten order of patches.
    w_mat = w_b.reshape(c_out, c_in * kh * kw).T
    w_mat = jnp.pad(w_mat, ((0, k_pad - k_true), (0, c_pad - c_out)))
    gamma_p = jnp.pad(gamma.astype(jnp.float32).reshape(1, c_out),
                      ((0, 0), (0, c_pad - c_out)))
    beta_p = jnp.pad(beta.astype(jnp.float32).reshape(1, c_out),
                     ((0, 0), (0, c_pad - c_out)))

    vmem_bytes = 32 * 1024 * 1024  # safe on v5e/v6e/v7x, above the v5e default

    # Pass 1: tiled GEMM + channel statistics.
    conv_out, ch_sum, ch_sq = pl.pallas_call(
        conv_stats_kernel,
        out_shape=(jax.ShapeDtypeStruct((m_pad, c_pad), jnp.float32),
                   jax.ShapeDtypeStruct((1, c_pad), jnp.float32),
                   jax.ShapeDtypeStruct((1, c_pad), jnp.float32)),
        grid=(num_tiles,),
        in_specs=[
            pl.BlockSpec((tm_eff, k_pad), lambda i: (i, 0)),
            pl.BlockSpec((k_pad, c_pad), lambda i: (0, 0)),   # weights resident
        ],
        out_specs=(
            pl.BlockSpec((tm_eff, c_pad), lambda i: (i, 0)),
            pl.BlockSpec((1, c_pad), lambda i: (0, 0)),        # resident accumulators
            pl.BlockSpec((1, c_pad), lambda i: (0, 0)),
        ),
        compiler_params=pltpu.CompilerParams(
            dimension_semantics=("arbitrary",),
            vmem_limit_bytes=vmem_bytes),
    )(patches_p, w_mat)

    # Fold BatchNorm (training-mode biased variance, eps=1e-5) + affine into a
    # per-channel scale/shift.  Padded channels have gamma=beta=0 -> scale=shift=0.
    m_f = jnp.float32(m_true)
    mean = ch_sum / m_f
    var = ch_sq / m_f - mean * mean
    inv = jax.lax.rsqrt(var + jnp.float32(1e-5))
    scale = gamma_p * inv
    shift = beta_p - mean * scale

    # Pass 2: normalize + LeakyReLU(0.1); fully parallel over M tiles.
    y = pl.pallas_call(
        bn_lrelu_kernel,
        out_shape=jax.ShapeDtypeStruct((m_pad, c_pad), jnp.float32),
        grid=(num_tiles,),
        in_specs=[
            pl.BlockSpec((tm_eff, c_pad), lambda i: (i, 0)),
            pl.BlockSpec((1, c_pad), lambda i: (0, 0)),
            pl.BlockSpec((1, c_pad), lambda i: (0, 0)),
        ],
        out_specs=pl.BlockSpec((tm_eff, c_pad), lambda i: (i, 0)),
        compiler_params=pltpu.CompilerParams(
            dimension_semantics=("parallel",),
            vmem_limit_bytes=vmem_bytes),
    )(conv_out, scale, shift)

    # Slice off padding; back to NCHW (PyTorch layout).  A NHWC-native consumer
    # could skip this final transpose entirely.
    out = y[:m_true, :c_out].reshape(n, oh, ow, c_out).transpose(0, 3, 1, 2)
    return out


if __name__ == "__main__":
    key = jax.random.PRNGKey(0)
    k_x, k_w, k_g, k_b = jax.random.split(key, 4)

    # CNNBlock(in_channels=4, out_channels=8, kernel_size=3, stride=1, padding=1)
    N, C_IN, H, W = 2, 4, 16, 16
    C_OUT, KH, KW = 8, 3, 3

    x = jax.random.normal(k_x, (N, C_IN, H, W), dtype=jnp.float32)
    weight = jax.random.normal(k_w, (C_OUT, C_IN, KH, KW), dtype=jnp.float32) * 0.1
    gamma = 1.0 + 0.1 * jax.random.normal(k_g, (C_OUT,), dtype=jnp.float32)
    beta = 0.1 * jax.random.normal(k_b, (C_OUT,), dtype=jnp.float32)

    out = cnn_block(x, weight, gamma, beta, stride=1, padding=1)
    jax.block_until_ready(out)

    # Reference: same math on the same bf16-rounded conv operands (the kernel
    # feeds the MXU bf16 with f32 accumulation), BN stats in f32.
    x_r = x.astype(jnp.bfloat16).astype(jnp.float32)
    w_r = weight.astype(jnp.bfloat16).astype(jnp.float32)
    ref_conv = jax.lax.conv_general_dilated(
        x_r, w_r, window_strides=(1, 1), padding=((1, 1), (1, 1)),
        dimension_numbers=("NCHW", "OIHW", "NCHW"))
    rmean = ref_conv.mean(axis=(0, 2, 3), keepdims=True)
    rvar = ((ref_conv - rmean) ** 2).mean(axis=(0, 2, 3), keepdims=True)
    ref = (ref_conv - rmean) * jax.lax.rsqrt(rvar + 1e-5)
    ref = ref * gamma.reshape(1, -1, 1, 1) + beta.reshape(1, -1, 1, 1)
    ref = jnp.where(ref > 0, ref, 0.1 * ref)

    assert out.shape == ref.shape == (N, C_OUT, H, W)
    err = jnp.max(jnp.abs(out - ref))
    assert err < 5e-3, f"max abs error {err}"

    print("KERNEL_OK")
</pallas_src>

<mosaic_0001>
module attributes {stable_mosaic.version = 11 : i64} {
  func.func @conv_stats_kernel(%arg0: i32, %arg1: memref<256x40xbf16, #tpu.memory_space<vmem>>, %arg2: memref<40x128xbf16, #tpu.memory_space<vmem>>, %arg3: memref<256x128xf32, #tpu.memory_space<vmem>>, %arg4: memref<1x128xf32, #tpu.memory_space<vmem>>, %arg5: memref<1x128xf32, #tpu.memory_space<vmem>>) attributes {dimension_semantics = [#tpu.dimension_semantics<arbitrary>], iteration_bounds = array<i64: 2>, scalar_prefetch = 0 : i64, scratch_operands = 0 : i64, tpu.core_type = #tpu.core_type<tc>, window_params = [{transform_indices = @transform_0, window_bounds = array<i64: 256, 40>}, {pipeline_mode = #tpu.pipeline_mode<synchronous>, transform_indices = @transform_1, window_bounds = array<i64: 40, 128>}, {transform_indices = @transform_2, window_bounds = array<i64: 256, 128>}, {pipeline_mode = #tpu.pipeline_mode<synchronous>, transform_indices = @transform_3, window_bounds = array<i64: 1, 128>}, {pipeline_mode = #tpu.pipeline_mode<synchronous>, transform_indices = @transform_4, window_bounds = array<i64: 1, 128>}]} {
    %c0 = arith.constant 0 : index
    %c0_0 = arith.constant 0 : index
    %0 = vector.load %arg1[%c0, %c0_0] : memref<256x40xbf16, #tpu.memory_space<vmem>>, vector<256x40xbf16>
    %c0_1 = arith.constant 0 : index
    %c0_2 = arith.constant 0 : index
    %1 = vector.load %arg2[%c0_1, %c0_2] : memref<40x128xbf16, #tpu.memory_space<vmem>>, vector<40x128xbf16>
    %cst = arith.constant dense<0.000000e+00> : vector<256x128xf32>
    %2 = tpu.matmul %0, %1, %cst {dimension_numbers = #tpu.dot_dimension_numbers<[1], [0], [0], [1], [0, 0, 1, 1], [], []>} : vector<256x40xbf16>, vector<40x128xbf16>, vector<256x128xf32> -> vector<256x128xf32>
    %c0_3 = arith.constant 0 : index
    %c0_4 = arith.constant 0 : index
    %3 = vector.load %arg3[%c0_3, %c0_4] : memref<256x128xf32, #tpu.memory_space<vmem>>, vector<256x128xf32>
    tpu.vector_store %arg3[%c0_3, %c0_4], %2 {strides = array<i32>} : memref<256x128xf32, #tpu.memory_space<vmem>>, vector<256x128xf32>,
    %c0_i32 = arith.constant 0 : i32
    %4 = arith.cmpi eq, %arg0, %c0_i32 : i32
    %5 = arith.extui %4 : i1 to i32
    %c0_i32_5 = arith.constant 0 : i32
    %6 = arith.cmpi ne, %5, %c0_i32_5 : i32
    scf.if %6 {
      %cst_16 = arith.constant 0.000000e+00 : f32
      %18 = vector.broadcast %cst_16 : f32 to vector<1x128xf32>
      %c0_17 = arith.constant 0 : index
      %c0_18 = arith.constant 0 : index
      %19 = vector.load %arg4[%c0_17, %c0_18] : memref<1x128xf32, #tpu.memory_space<vmem>>, vector<1x128xf32>
      tpu.vector_store %arg4[%c0_17, %c0_18], %18 {strides = array<i32>} : memref<1x128xf32, #tpu.memory_space<vmem>>, vector<1x128xf32>,
      %cst_19 = arith.constant 0.000000e+00 : f32
      %20 = vector.broadcast %cst_19 : f32 to vector<1x128xf32>
      %c0_20 = arith.constant 0 : index
      %c0_21 = arith.constant 0 : index
      %21 = vector.load %arg5[%c0_20, %c0_21] : memref<1x128xf32, #tpu.memory_space<vmem>>, vector<1x128xf32>
      tpu.vector_store %arg5[%c0_20, %c0_21], %20 {strides = array<i32>} : memref<1x128xf32, #tpu.memory_space<vmem>>, vector<1x128xf32>,
    } else {
    }
    %c0_6 = arith.constant 0 : index
    %c0_7 = arith.constant 0 : index
    %7 = vector.load %arg4[%c0_6, %c0_7] : memref<1x128xf32, #tpu.memory_space<vmem>>, vector<1x128xf32>
    %cst_8 = arith.constant dense<0.000000e+00> : vector<128xf32>
    %8 = vector.multi_reduction <add>, %2, %cst_8 [0] : vector<256x128xf32> to vector<128xf32>
    %9 = vector.shape_cast %8 : vector<128xf32> to vector<1x128xf32>
    %10 = arith.addf %7, %9 : vector<1x128xf32>
    %c0_9 = arith.constant 0 : index
    %c0_10 = arith.constant 0 : index
    %11 = vector.load %arg4[%c0_9, %c0_10] : memref<1x128xf32, #tpu.memory_space<vmem>>, vector<1x128xf32>
    tpu.vector_store %arg4[%c0_9, %c0_10], %10 {strides = array<i32>} : memref<1x128xf32, #tpu.memory_space<vmem>>, vector<1x128xf32>,
    %c0_11 = arith.constant 0 : index
    %c0_12 = arith.constant 0 : index
    %12 = vector.load %arg5[%c0_11, %c0_12] : memref<1x128xf32, #tpu.memory_space<vmem>>, vector<1x128xf32>
    %13 = arith.mulf %2, %2 : vector<256x128xf32>
    %cst_13 = arith.constant dense<0.000000e+00> : vector<128xf32>
    %14 = vector.multi_reduction <add>, %13, %cst_13 [0] : vector<256x128xf32> to vector<128xf32>
    %15 = vector.shape_cast %14 : vector<128xf32> to vector<1x128xf32>
    %16 = arith.addf %12, %15 : vector<1x128xf32>
    %c0_14 = arith.constant 0 : index
    %c0_15 = arith.constant 0 : index
    %17 = vector.load %arg5[%c0_14, %c0_15] : memref<1x128xf32, #tpu.memory_space<vmem>>, vector<1x128xf32>
    tpu.vector_store %arg5[%c0_14, %c0_15], %16 {strides = array<i32>} : memref<1x128xf32, #tpu.memory_space<vmem>>, vector<1x128xf32>,
    return
  }
  func.func @transform_0(%arg0: i32) -> (i32, i32) {
    %c0_i32 = arith.constant 0 : i32
    %c0_i32_0 = arith.constant 0 : i32
    return %arg0, %c0_i32 : i32, i32
  }
  func.func @transform_1(%arg0: i32) -> (i32, i32) {
    %c0_i32 = arith.constant 0 : i32
    %c0_i32_0 = arith.constant 0 : i32
    %c0_i32_1 = arith.constant 0 : i32
    return %c0_i32, %c0_i32_0 : i32, i32
  }
  func.func @transform_2(%arg0: i32) -> (i32, i32) {
    %c0_i32 = arith.constant 0 : i32
    %c0_i32_0 = arith.constant 0 : i32
    return %arg0, %c0_i32 : i32, i32
  }
  func.func @transform_3(%arg0: i32) -> (i32, i32) {
    %c0_i32 = arith.constant 0 : i32
    %c0_i32_0 = arith.constant 0 : i32
    %c0_i32_1 = arith.constant 0 : i32
    return %c0_i32, %c0_i32_0 : i32, i32
  }
  func.func @transform_4(%arg0: i32) -> (i32, i32) {
    %c0_i32 = arith.constant 0 : i32
    %c0_i32_0 = arith.constant 0 : i32
    %c0_i32_1 = arith.constant 0 : i32
    return %c0_i32, %c0_i32_0 : i32, i32
  }
}

</mosaic_0001>

<llo_original>
// kernel: tpu_custom_call.1
$region0: #{tpu_custom_call.1}
  #allocation0 [shape = 'u32[]', space=smem, size = 0x4, offset = 0x4, fixed_abs, tag = 'smem constant byte address 0x4 - core index']
  #allocation1 [shape = 'u32[72,128]{1,0:T(1,128)}', space=vmem, size = 0x9000, scoped, tag = 'internal scratch']
  %s0 = inlined_call_operand.vmem [shape: bf16[512,40], index: 0, kind: input, shape index: {}]
  %s1 = inlined_call_operand.vmem [shape: bf16[40,128], index: 1, kind: input, shape index: {}]
  %s2 = inlined_call_operand.hbm [shape: f32[512,128], index: 2, kind: output, shape index: {0}]
  %s3 = inlined_call_operand.hbm [shape: f32[1,128], index: 3, kind: output, shape index: {1}]
  %s4 = inlined_call_operand.hbm [shape: f32[1,128], index: 4, kind: output, shape index: {2}]
  %5 = xla_tuple %s2, %s3, %s4
  %s6 = sld [smem:[#allocation0]]
  $region61: #{tpu_custom_call.1} parent=0
    _
  %s8 = ssub.s32 1, %s6
  %s9 = scalar_select 0, %s8, %s6
  $region1: #{tpu_custom_call.1} parent=0
    #allocation2 [shape = 'u8[262144]{0}', space=vmem, size = 0x40000, scoped, tag = 'output window, operand 0']
    #allocation3 [shape = 's32[2]{0}', space=sflag, size = 0x8, scoped, tag = 'scoped memory for tpu_custom_call.1']
    #allocation4 [shape = 'u8[512]{0}', space=vmem, size = 0x400, scoped, tag = 'output window, operand 1, single buffered']
    #allocation5 [shape = 's32[1]{0}', space=sflag, size = 0x4, scoped, tag = 'scoped memory for tpu_custom_call.1']
    #allocation6 [shape = 'u8[512]{0}', space=vmem, size = 0x400, scoped, tag = 'output window, operand 2, single buffered']
    %10 = vsyncpa [#allocation3], 0
    %s11 = scalar_lea.sflag [#allocation3], 1
    %12 = vsyncpa %s11, 0
    %13 = vsyncpa [#allocation5], 0
    loop: start=0, step=1, limit=4
    $region2: #{tpu_custom_call.1} parent=1 // loop_pre_header
      _
    $region3: #{tpu_custom_call.1} parent=1 // loop_header
      %s15 = sphi 0, %s19
      %p16 = scmp.ge.s32.totalorder %s15, 4
      %s25 = sphi 0, %s27
      %s28 = sphi 0, %s25
      %s29 = sphi 0, %s28
      %s45 = sphi 0, %s29
      %s49 = sphi 0, %s49
      %s51 = sphi 0, %s49
      %s52 = sphi 0, %s51
      %s66 = sphi 0, %s52
      %s72 = sphi 0, %s74
      %s75 = sphi 0, %s72
      %s76 = sphi 0, %s75
      %s92 = sphi 0, %s76
      %s96 = sphi 0, %s96
      %s98 = sphi 0, %s96
      %s99 = sphi 0, %s98
      %s113 = sphi 0, %s99
      %s117 = sphi 0, %s117
      %s119 = sphi 0, %s117
      %s120 = sphi 0, %s119
      %s134 = sphi 0, %s120
    $region4: #{tpu_custom_call.1} parent=1 // loop_header_branch
      %18 = sbr.rel (%p16) target = $region8
    $region5: #{tpu_custom_call.1} parent=1 // loop_body
      %s20 = ssub.s32 %s15, 1
      %s21 = ssub.s32 %s15, 2
      %s22 = sadd.s32 %s15, 1
      %s23 = ssub.s32 %s15, %s22
      %p24 = scmp.eq.s32.totalorder %s23, 0
      %s26 = sadd.s32 %s25, 1
      %s27 = scalar_select %p24, %s25, %s26
      %p30 = pneg %p24
      %p31 = scmp.eq.s32.totalorder %s15, 1
      %p32 = por %p30, %p31
      %p33 = scmp.ne.s32.totalorder %s25, %s28
      %p34 = scmp.eq.s32.totalorder %s15, 0
      %p35 = por %p33, %p34
      %p36 = scmp.ne.s32.totalorder %s25, %s28
      %p37 = scmp.eq.s32.totalorder %s20, 1
      %p38 = por %p36, %p37
      %p39 = scmp.ne.s32.totalorder %s28, %s29
      %p40 = scmp.eq.s32.totalorder %s20, 0
      %p41 = por %p39, %p40
      %p42 = scmp.ne.s32.totalorder %s28, %s29
      %p43 = scmp.eq.s32.totalorder %s21, 1
      %p44 = por %p42, %p43
      %p46 = scmp.ne.s32.totalorder %s29, %s45
      %p47 = scmp.eq.s32.totalorder %s21, 0
      %p48 = por %p46, %p47
      %s50 = sadd.s32 %s49, 1
      %p53 = scmp.eq.s32.totalorder %s15, 1
      %p54 = scmp.ne.s32.totalorder %s49, %s51
      %p55 = scmp.eq.s32.totalorder %s15, 0
      %p56 = por %p54, %p55
      %p57 = scmp.ne.s32.totalorder %s49, %s51
      %p58 = scmp.eq.s32.totalorder %s20, 1
      %p59 = por %p57, %p58
      %p60 = scmp.ne.s32.totalorder %s51, %s52
      %p61 = scmp.eq.s32.totalorder %s20, 0
      %p62 = por %p60, %p61
      %p63 = scmp.ne.s32.totalorder %s51, %s52
      %p64 = scmp.eq.s32.totalorder %s21, 1
      %p65 = por %p63, %p64
      %p67 = scmp.ne.s32.totalorder %s52, %s66
      %p68 = scmp.eq.s32.totalorder %s21, 0
      %p69 = por %p67, %p68
      %s70 = ssub.s32 %s15, %s22
      %p71 = scmp.eq.s32.totalorder %s70, 0
      %s73 = sadd.s32 %s72, 1
      %s74 = scalar_select %p71, %s72, %s73
      %p77 = pneg %p71
      %p78 = scmp.eq.s32.totalorder %s15, 1
      %p79 = por %p77, %p78
      %p80 = scmp.ne.s32.totalorder %s72, %s75
      %p81 = scmp.eq.s32.totalorder %s15, 0
      %p82 = por %p80, %p81
      %p83 = scmp.ne.s32.totalorder %s72, %s75
      %p84 = scmp.eq.s32.totalorder %s20, 1
      %p85 = por %p83, %p84
      %p86 = scmp.ne.s32.totalorder %s75, %s76
      %p87 = scmp.eq.s32.totalorder %s20, 0
      %p88 = por %p86, %p87
      %p89 = scmp.ne.s32.totalorder %s75, %s76
      %p90 = scmp.eq.s32.totalorder %s21, 1
      %p91 = por %p89, %p90
      %p93 = scmp.ne.s32.totalorder %s76, %s92
      %p94 = scmp.eq.s32.totalorder %s21, 0
      %p95 = por %p93, %p94
      %s97 = sadd.s32 %s96, 1
      %p100 = scmp.eq.s32.totalorder %s15, 1
      %p101 = scmp.ne.s32.totalorder %s96, %s98
      %p102 = scmp.eq.s32.totalorder %s15, 0
      %p103 = por %p101, %p102
      %p104 = scmp.ne.s32.totalorder %s96, %s98
      %p105 = scmp.eq.s32.totalorder %s20, 1
      %p106 = por %p104, %p105
      %p107 = scmp.ne.s32.totalorder %s98, %s99
      %p108 = scmp.eq.s32.totalorder %s20, 0
      %p109 = por %p107, %p108
      %p110 = scmp.ne.s32.totalorder %s98, %s99
      %p111 = scmp.eq.s32.totalorder %s21, 1
      %p112 = por %p110, %p111
      %p114 = scmp.ne.s32.totalorder %s99, %s113
      %p115 = scmp.eq.s32.totalorder %s21, 0
      %p116 = por %p114, %p115
      %s118 = sadd.s32 %s117, 1
      %p121 = scmp.eq.s32.totalorder %s15, 1
      %p122 = scmp.ne.s32.totalorder %s117, %s119
      %p123 = scmp.eq.s32.totalorder %s15, 0
      %p124 = por %p122, %p123
      %p125 = scmp.ne.s32.totalorder %s117, %s119
      %p126 = scmp.eq.s32.totalorder %s20, 1
      %p127 = por %p125, %p126
      %p128 = scmp.ne.s32.totalorder %s119, %s120
      %p129 = scmp.eq.s32.totalorder %s20, 0
      %p130 = por %p128, %p129
      %p131 = scmp.ne.s32.totalorder %s119, %s120
      %p132 = scmp.eq.s32.totalorder %s21, 1
      %p133 = por %p131, %p132
      %p135 = scmp.ne.s32.totalorder %s120, %s134
      %p136 = scmp.eq.s32.totalorder %s21, 0
      %p137 = por %p135, %p136
      %p138 = scmp.le.s32.totalorder 1, %s15
      %p139 = scmp.lt.s32.totalorder %s15, 3
      %p140 = pnand %p138, %p139
      %p141 = pneg %p140
      // Predicated region
      $region9: #{tpu_custom_call.1} parent=5 // pred_check
        _
      $region10: #{tpu_custom_call.1} parent=5 // pred_check_branch
        %143 = sbr.rel (%p140) target = $region12
      $region11: #{tpu_custom_call.1} parent=5 // pred_region
        %s144 = ssub.s32 %s15, 1
        // Predicated region
        $region13: #{tpu_custom_call.1} parent=11 // pred_check
          %p145 = pneg %p62
        $region14: #{tpu_custom_call.1} parent=11 // pred_check_branch
          %147 = sbr.rel (%p145) target = $region16
        $region15: #{tpu_custom_call.1} parent=11 // pred_region
          _
        $region16: #{tpu_custom_call.1} parent=11 // pred_fallthru
          _
      $region12: #{tpu_custom_call.1} parent=5 // pred_fallthru
        _
      %p148 = scmp.lt.s32.totalorder %s15, 2
      // Predicated region
      $region17: #{tpu_custom_call.1} parent=5 // pred_check
        %p149 = pneg %p148
      $region18: #{tpu_custom_call.1} parent=5 // pred_check_branch
        %151 = sbr.rel (%p149) target = $region20
      $region19: #{tpu_custom_call.1} parent=5 // pred_region
        // Predicated region
        $region21: #{tpu_custom_call.1} parent=19 // pred_check
          %p152 = pneg %p35
        $region22: #{tpu_custom_call.1} parent=19 // pred_check_branch
          %154 = sbr.rel (%p152) target = $region24
        $region23: #{tpu_custom_call.1} parent=19 // pred_region
          %s155 = smul.u32 32, %s15
          %p156 = scmp.lt.s32.totalorder %s155, 63
          %s157 = scalar_select %p156, %s155, 63
          %s158 = smul.addr %s157, 4
          %s159 = scalar_lea.vmem %s0, %s158
          %s160 = smul.u32 32, %s15
        $region24: #{tpu_custom_call.1} parent=19 // pred_fallthru
          _
      $region20: #{tpu_custom_call.1} parent=5 // pred_fallthru
        _
      %p161 = scmp.le.s32.totalorder 1, %s15
      %p162 = scmp.lt.s32.totalorder %s15, 3
      %p163 = pnand %p161, %p162
      %p164 = pneg %p163
      // Predicated region
      $region25: #{tpu_custom_call.1} parent=5 // pred_check
        _
      $region26: #{tpu_custom_call.1} parent=5 // pred_check_branch
        %166 = sbr.rel (%p163) target = $region28
      $region27: #{tpu_custom_call.1} parent=5 // pred_region
        %s167 = ssub.s32 %s15, 1
        %s168 = smul.u32 32, %s20
        %p169 = scmp.lt.s32.totalorder %s168, 63
        %s170 = scalar_select %p169, %s168, 63
        %s171 = smul.addr %s170, 4
        %s172 = scalar_lea.vmem %s0, %s171
        %p173 = pneg %p41
        %p174 = pneg %p38
        %p175 = pneg %p62
        %p176 = pneg %p59
        %p177 = pneg %p88
        %p178 = pneg %p85
        %s179 = sand.u32 %s75, 1
        %s180 = scalar_lea.sflag [#allocation3], %s179
        %s181 = sand.u32 %s75, 1
        %s182 = smul.addr %s181, 256
        %s183 = scalar_lea.vmem [#allocation2], %s182
        %p184 = pneg %p109
        %p185 = pneg %p106
        %p186 = pneg %p130
        %p187 = pneg %p127
        %s188 = smul.u32 32, %s20
        %p189 = scmp.lt.s32.totalorder %s188, 63
        %s190 = scalar_select %p189, %s188, 63
        %s191 = smul.addr %s190, 4
        %s192 = scalar_lea.vmem %s0, %s191
        %s193 = smul.u32 32, %s20
        %s194 = smul.u32 32, %s20
        %v196 = vld [vmem:[%s192] sm:$0xf]
        %v197 = vld [vmem:[%s192 + $0x4] sm:$0xf]
        %v198 = vld [vmem:[%s192 + $0x8] sm:$0xf]
        %v199 = vld [vmem:[%s192 + $0xc] sm:$0xf]
        %v200 = vld [vmem:[%s192 + $0x10] sm:$0xf]
        %v201 = vld [vmem:[%s192 + $0x14] sm:$0xf]
        %v202 = vld [vmem:[%s192 + $0x18] sm:$0xf]
        %v203 = vld [vmem:[%s192 + $0x1c] sm:$0xf]
        %v204 = vld [vmem:[%s192 + $0x20] sm:$0xf]
        %v205 = vld [vmem:[%s192 + $0x24] sm:$0xf]
        %v206 = vld [vmem:[%s192 + $0x28] sm:$0xf]
        %v207 = vld [vmem:[%s192 + $0x2c] sm:$0xf]
        %v208 = vld [vmem:[%s192 + $0x30] sm:$0xf]
        %v209 = vld [vmem:[%s192 + $0x34] sm:$0xf]
        %v210 = vld [vmem:[%s192 + $0x38] sm:$0xf]
        %v211 = vld [vmem:[%s192 + $0x3c] sm:$0xf]
        %v212 = vld [vmem:[%s192 + $0x40] sm:$0xf]
        %v213 = vld [vmem:[%s192 + $0x44] sm:$0xf]
        %v214 = vld [vmem:[%s192 + $0x48] sm:$0xf]
        %v215 = vld [vmem:[%s192 + $0x4c] sm:$0xf]
        %v216 = vld [vmem:[%s192 + $0x50] sm:$0xf]
        %v217 = vld [vmem:[%s192 + $0x54] sm:$0xf]
        %v218 = vld [vmem:[%s192 + $0x58] sm:$0xf]
        %v219 = vld [vmem:[%s192 + $0x5c] sm:$0xf]
        %v220 = vld [vmem:[%s192 + $0x60] sm:$0xf]
        %v221 = vld [vmem:[%s192 + $0x64] sm:$0xf]
        %v222 = vld [vmem:[%s192 + $0x68] sm:$0xf]
        %v223 = vld [vmem:[%s192 + $0x6c] sm:$0xf]
        %v224 = vld [vmem:[%s192 + $0x70] sm:$0xf]
        %v225 = vld [vmem:[%s192 + $0x74] sm:$0xf]
        %v226 = vld [vmem:[%s192 + $0x78] sm:$0xf]
        %v227 = vld [vmem:[%s192 + $0x7c] sm:$0xf]
        %v228 = vld [vmem:[%s1] sm:$0xf]
        %v229 = vld [vmem:[%s1 + $0x4] sm:$0xf]
        %v230 = vld [vmem:[%s1 + $0x8] sm:$0xf]
        %v231 = vld [vmem:[%s1 + $0xc] sm:$0xf]
        %v232 = vld [vmem:[%s1 + $0x10] sm:$0xf]
        %v265 = vunpack.c.l.b16 %v196
        %v266 = vunpack.c.l.b16 %v197
        %v267 = vunpack.c.l.b16 %v198
        %v268 = vunpack.c.l.b16 %v199
        %v269 = vunpack.c.l.b16 %v200
        %v270 = vunpack.c.l.b16 %v201
        %v271 = vunpack.c.l.b16 %v202
        %v272 = vunpack.c.l.b16 %v203
        %v273 = vunpack.c.l.b16 %v204
        %v274 = vunpack.c.l.b16 %v205
        %v275 = vunpack.c.l.b16 %v206
        %v276 = vunpack.c.l.b16 %v207
        %v277 = vunpack.c.l.b16 %v208
        %v278 = vunpack.c.l.b16 %v209
        %v279 = vunpack.c.l.b16 %v210
        %v280 = vunpack.c.l.b16 %v211
        %v281 = vunpack.c.l.b16 %v212
        %v282 = vunpack.c.l.b16 %v213
        %v283 = vunpack.c.l.b16 %v214
        %v284 = vunpack.c.l.b16 %v215
        %v285 = vunpack.c.l.b16 %v216
        %v286 = vunpack.c.l.b16 %v217
        %v287 = vunpack.c.l.b16 %v218
        %v288 = vunpack.c.l.b16 %v219
        %v289 = vunpack.c.l.b16 %v220
        %v290 = vunpack.c.l.b16 %v221
        %v291 = vunpack.c.l.b16 %v222
        %v292 = vunpack.c.l.b16 %v223
        %v293 = vunpack.c.l.b16 %v224
        %v294 = vunpack.c.l.b16 %v225
        %v295 = vunpack.c.l.b16 %v226
        %v296 = vunpack.c.l.b16 %v227
        %v297 = vpack.c.b16 %v266, %v265
        %v298 = vpack.c.b16 %v268, %v267
        %v299 = vpack.c.b16 %v270, %v269
        %v300 = vpack.c.b16 %v272, %v271
        %v301 = vpack.c.b16 %v274, %v273
        %v302 = vpack.c.b16 %v276, %v275
        %v303 = vpack.c.b16 %v278, %v277
        %v304 = vpack.c.b16 %v280, %v279
        %v305 = vpack.c.b16 %v282, %v281
        %v306 = vpack.c.b16 %v284, %v283
        %v307 = vpack.c.b16 %v286, %v285
        %v308 = vpack.c.b16 %v288, %v287
        %v309 = vpack.c.b16 %v290, %v289
        %v310 = vpack.c.b16 %v292, %v291
        %v311 = vpack.c.b16 %v294, %v293
        %v312 = vpack.c.b16 %v296, %v295
        %v318 = vunpack.c.l.b16 %v228
        %v319 = vunpack.c.l.b16 %v229
        %v320 = vunpack.c.l.b16 %v230
        %v321 = vunpack.c.l.b16 %v231
        %v322 = vunpack.c.l.b16 %v232
        %v323 = vpack.c.b16 %v319, %v318
        %v324 = vpack.c.b16 %v321, %v320
        %v325 = vpack.c.b16 %v322, %v322
        %vm328 = vcmask 326656
        %v330 = vsel %vm328, %v297, 0
        %v333 = vsel %vm328, %v298, 0
        %v336 = vsel %vm328, %v299, 0
        %v339 = vsel %vm328, %v300, 0
        %v342 = vsel %vm328, %v301, 0
        %v345 = vsel %vm328, %v302, 0
        %v348 = vsel %vm328, %v303, 0
        %v351 = vsel %vm328, %v304, 0
        %v354 = vsel %vm328, %v305, 0
        %v357 = vsel %vm328, %v306, 0
        %v360 = vsel %vm328, %v307, 0
        %v363 = vsel %vm328, %v308, 0
        %v366 = vsel %vm328, %v309, 0
        %v369 = vsel %vm328, %v310, 0
        %v372 = vsel %vm328, %v311, 0
        %v375 = vsel %vm328, %v312, 0
        %vm377 = vcmask 1043456
        %v379 = vsel %vm377, %v325, 0
        %381 = vmatpush.bf16.msra.mxu0 0
        %382 = vmatpush.bf16.msra.mxu0 0
        %383 = vmatpush.bf16.msra.mxu0 0
        %384 = vmatpush.bf16.msra.mxu0 0
        %385 = vmatpush.bf16.msra.mxu0 0
        %386 = vmatpush.bf16.msra.mxu0 %v379
        %387 = vmatpush.bf16.msra.mxu0 %v324
        %388 = vmatpush.bf16.msra.mxu0 %v323
        %389 = vmatmul.bf16.gmra.mxu0 %v330
        %v390 = vpop.f32.mrf.mxu0
        %v391 = vadd.f32 0.0, %v390
        %v392 = vpop.f32.mrf.mxu0
        %v393 = vadd.f32 0.0, %v392
        %394 = vmatmul.bf16.gmra.mxu0 %v333
        %v395 = vpop.f32.mrf.mxu0
        %v396 = vadd.f32 0.0, %v395
        %v397 = vpop.f32.mrf.mxu0
        %v398 = vadd.f32 0.0, %v397
        %399 = vmatmul.bf16.gmra.mxu0 %v336
        %v400 = vpop.f32.mrf.mxu0
        %v401 = vadd.f32 0.0, %v400
        %v402 = vpop.f32.mrf.mxu0
        %v403 = vadd.f32 0.0, %v402
        %404 = vmatmul.bf16.gmra.mxu0 %v339
        %v405 = vpop.f32.mrf.mxu0
        %v406 = vadd.f32 0.0, %v405
        %v407 = vpop.f32.mrf.mxu0
        %v408 = vadd.f32 0.0, %v407
        %409 = vmatmul.bf16.gmra.mxu0 %v342
        %v410 = vpop.f32.mrf.mxu0
        %v411 = vadd.f32 0.0, %v410
        %v412 = vpop.f32.mrf.mxu0
        %v413 = vadd.f32 0.0, %v412
        %414 = vmatmul.bf16.gmra.mxu0 %v345
        %v415 = vpop.f32.mrf.mxu0
        %v416 = vadd.f32 0.0, %v415
        %v417 = vpop.f32.mrf.mxu0
        %v418 = vadd.f32 0.0, %v417
        %419 = vmatmul.bf16.gmra.mxu0 %v348
        %v420 = vpop.f32.mrf.mxu0
        %v421 = vadd.f32 0.0, %v420
        %v422 = vpop.f32.mrf.mxu0
        %v423 = vadd.f32 0.0, %v422
        %424 = vmatmul.bf16.gmra.mxu0 %v351
        %v425 = vpop.f32.mrf.mxu0
        %v426 = vadd.f32 0.0, %v425
        %v427 = vpop.f32.mrf.mxu0
        %v428 = vadd.f32 0.0, %v427
        %429 = vmatmul.bf16.gmra.mxu0 %v354
        %v430 = vpop.f32.mrf.mxu0
        %v431 = vadd.f32 0.0, %v430
        %v432 = vpop.f32.mrf.mxu0
        %v433 = vadd.f32 0.0, %v432
        %434 = vmatmul.bf16.gmra.mxu0 %v357
        %v435 = vpop.f32.mrf.mxu0
        %v436 = vadd.f32 0.0, %v435
        %v437 = vpop.f32.mrf.mxu0
        %v438 = vadd.f32 0.0, %v437
        %439 = vmatmul.bf16.gmra.mxu0 %v360
        %v440 = vpop.f32.mrf.mxu0
        %v441 = vadd.f32 0.0, %v440
        %v442 = vpop.f32.mrf.mxu0
        %v443 = vadd.f32 0.0, %v442
        %444 = vmatmul.bf16.gmra.mxu0 %v363
        %v445 = vpop.f32.mrf.mxu0
        %v446 = vadd.f32 0.0, %v445
        %v447 = vpop.f32.mrf.mxu0
        %v448 = vadd.f32 0.0, %v447
        %449 = vmatmul.bf16.gmra.mxu0 %v366
        %v450 = vpop.f32.mrf.mxu0
        %v451 = vadd.f32 0.0, %v450
        %v452 = vpop.f32.mrf.mxu0
        %v453 = vadd.f32 0.0, %v452
        %454 = vmatmul.bf16.gmra.mxu0 %v369
        %v455 = vpop.f32.mrf.mxu0
        %v456 = vadd.f32 0.0, %v455
        %v457 = vpop.f32.mrf.mxu0
        %v458 = vadd.f32 0.0, %v457
        %459 = vmatmul.bf16.gmra.mxu0 %v372
        %v460 = vpop.f32.mrf.mxu0
        %v461 = vadd.f32 0.0, %v460
        %v462 = vpop.f32.mrf.mxu0
        %v463 = vadd.f32 0.0, %v462
        %464 = vmatmul.bf16.gmra.mxu0 %v375
        %v465 = vpop.f32.mrf.mxu0
        %v466 = vadd.f32 0.0, %v465
        %v467 = vpop.f32.mrf.mxu0
        %v468 = vadd.f32 0.0, %v467
        %469 = vdwg.mxu0
        %470 = vst [vmem:[%s183] sm:$0xff] %v391
        %471 = vst [vmem:[%s183 + $0x8] sm:$0xff] %v393
        %472 = vst [vmem:[%s183 + $0x10] sm:$0xff] %v396
        %473 = vst [vmem:[%s183 + $0x18] sm:$0xff] %v398
        %474 = vst [vmem:[%s183 + $0x20] sm:$0xff] %v401
        %475 = vst [vmem:[%s183 + $0x28] sm:$0xff] %v403
        %476 = vst [vmem:[%s183 + $0x30] sm:$0xff] %v406
        %477 = vst [vmem:[%s183 + $0x38] sm:$0xff] %v408
        %478 = vst [vmem:[%s183 + $0x40] sm:$0xff] %v411
        %479 = vst [vmem:[%s183 + $0x48] sm:$0xff] %v413
        %480 = vst [vmem:[%s183 + $0x50] sm:$0xff] %v416
        %481 = vst [vmem:[%s183 + $0x58] sm:$0xff] %v418
        %482 = vst [vmem:[%s183 + $0x60] sm:$0xff] %v421
        %483 = vst [vmem:[%s183 + $0x68] sm:$0xff] %v423
        %484 = vst [vmem:[%s183 + $0x70] sm:$0xff] %v426
        %485 = vst [vmem:[%s183 + $0x78] sm:$0xff] %v428
        %486 = vst [vmem:[%s183 + $0x80] sm:$0xff] %v431
        %487 = vst [vmem:[%s183 + $0x88] sm:$0xff] %v433
        %488 = vst [vmem:[%s183 + $0x90] sm:$0xff] %v436
        %489 = vst [vmem:[%s183 + $0x98] sm:$0xff] %v438
        %490 = vst [vmem:[%s183 + $0xa0] sm:$0xff] %v441
        %491 = vst [vmem:[%s183 + $0xa8] sm:$0xff] %v443
        %492 = vst [vmem:[%s183 + $0xb0] sm:$0xff] %v446
        %493 = vst [vmem:[%s183 + $0xb8] sm:$0xff] %v448
        %494 = vst [vmem:[%s183 + $0xc0] sm:$0xff] %v451
        %495 = vst [vmem:[%s183 + $0xc8] sm:$0xff] %v453
        %496 = vst [vmem:[%s183 + $0xd0] sm:$0xff] %v456
        %497 = vst [vmem:[%s183 + $0xd8] sm:$0xff] %v458
        %498 = vst [vmem:[%s183 + $0xe0] sm:$0xff] %v461
        %499 = vst [vmem:[%s183 + $0xe8] sm:$0xff] %v463
        %500 = vst [vmem:[%s183 + $0xf0] sm:$0xff] %v466
        %501 = vst [vmem:[%s183 + $0xf8] sm:$0xff] %v468
        %p502 = scmp.eq.s32.totalorder %s20, 0
        // Predicated region
        $region29: #{tpu_custom_call.1} parent=27 // pred_check
          %p503 = pneg %p502
        $region30: #{tpu_custom_call.1} parent=27 // pred_check_branch
          %505 = sbr.rel (%p503) target = $region32
        $region31: #{tpu_custom_call.1} parent=27 // pred_region
          %506 = vst [vmem:[#allocation4] sm:$0x1] 0.0
          %507 = vst [vmem:[#allocation6] sm:$0x1] 0.0
        $region32: #{tpu_custom_call.1} parent=27 // pred_fallthru
          _
        %v508 = vld [vmem:[#allocation4] sm:$0x1]
        %v509 = vadd.f32 %v391, %v393
        %v510 = vadd.f32 %v509, %v396
        %v511 = vadd.f32 %v510, %v398
        %v512 = vadd.f32 %v511, %v401
        %v513 = vadd.f32 %v512, %v403
        %v514 = vadd.f32 %v513, %v406
        %v515 = vadd.f32 %v514, %v408
        %v516 = vadd.f32 %v515, %v411
        %v517 = vadd.f32 %v516, %v413
        %v518 = vadd.f32 %v517, %v416
        %v519 = vadd.f32 %v518, %v418
        %v520 = vadd.f32 %v519, %v421
        %v521 = vadd.f32 %v520, %v423
        %v522 = vadd.f32 %v521, %v426
        %v523 = vadd.f32 %v522, %v428
        %v524 = vadd.f32 %v523, %v431
        %v525 = vadd.f32 %v524, %v433
        %v526 = vadd.f32 %v525, %v436
        %v527 = vadd.f32 %v526, %v438
        %v528 = vadd.f32 %v527, %v441
        %v529 = vadd.f32 %v528, %v443
        %v530 = vadd.f32 %v529, %v446
        %v531 = vadd.f32 %v530, %v448
        %v532 = vadd.f32 %v531, %v451
        %v533 = vadd.f32 %v532, %v453
        %v534 = vadd.f32 %v533, %v456
        %v535 = vadd.f32 %v534, %v458
        %v536 = vadd.f32 %v535, %v461
        %v537 = vadd.f32 %v536, %v463
        %v538 = vadd.f32 %v537, %v466
        %v539 = vadd.f32 %v538, %v468
        %v540 = vrot.slane %v539, 4
        %v541 = vadd.f32 %v539, %v540
        %v542 = vrot.slane %v541, 2
        %v543 = vadd.f32 %v541, %v542
        %v544 = vrot.slane %v543, 1
        %v545 = vadd.f32 %v543, %v544
        %v546 = vadd.f32 %v508, %v545
        %547 = vst [vmem:[#allocation4] sm:$0x1] %v546
        %v548 = vld [vmem:[#allocation6] sm:$0x1]
        %v549 = vmul.f32 %v391, %v391
        %v550 = vmul.f32 %v393, %v393
        %v551 = vmul.f32 %v396, %v396
        %v552 = vmul.f32 %v398, %v398
        %v553 = vmul.f32 %v401, %v401
        %v554 = vmul.f32 %v403, %v403
        %v555 = vmul.f32 %v406, %v406
        %v556 = vmul.f32 %v408, %v408
        %v557 = vmul.f32 %v411, %v411
        %v558 = vmul.f32 %v413, %v413
        %v559 = vmul.f32 %v416, %v416
        %v560 = vmul.f32 %v418, %v418
        %v561 = vmul.f32 %v421, %v421
        %v562 = vmul.f32 %v423, %v423
        %v563 = vmul.f32 %v426, %v426
        %v564 = vmul.f32 %v428, %v428
        %v565 = vmul.f32 %v431, %v431
        %v566 = vmul.f32 %v433, %v433
        %v567 = vmul.f32 %v436, %v436
        %v568 = vmul.f32 %v438, %v438
        %v569 = vmul.f32 %v441, %v441
        %v570 = vmul.f32 %v443, %v443
        %v571 = vmul.f32 %v446, %v446
        %v572 = vmul.f32 %v448, %v448
        %v573 = vmul.f32 %v451, %v451
        %v574 = vmul.f32 %v453, %v453
        %v575 = vmul.f32 %v456, %v456
        %v576 = vmul.f32 %v458, %v458
        %v577 = vmul.f32 %v461, %v461
        %v578 = vmul.f32 %v463, %v463
        %v579 = vmul.f32 %v466, %v466
        %v580 = vmul.f32 %v468, %v468
        %v581 = vadd.f32 %v549, %v550
        %v582 = vadd.f32 %v581, %v551
        %v583 = vadd.f32 %v582, %v552
        %v584 = vadd.f32 %v583, %v553
        %v585 = vadd.f32 %v584, %v554
        %v586 = vadd.f32 %v585, %v555
        %v587 = vadd.f32 %v586, %v556
        %v588 = vadd.f32 %v587, %v557
        %v589 = vadd.f32 %v588, %v558
        %v590 = vadd.f32 %v589, %v559
        %v591 = vadd.f32 %v590, %v560
        %v592 = vadd.f32 %v591, %v561
        %v593 = vadd.f32 %v592, %v562
        %v594 = vadd.f32 %v593, %v563
        %v595 = vadd.f32 %v594, %v564
        %v596 = vadd.f32 %v595, %v565
        %v597 = vadd.f32 %v596, %v566
        %v598 = vadd.f32 %v597, %v567
        %v599 = vadd.f32 %v598, %v568
        %v600 = vadd.f32 %v599, %v569
        %v601 = vadd.f32 %v600, %v570
        %v602 = vadd.f32 %v601, %v571
        %v603 = vadd.f32 %v602, %v572
        %v604 = vadd.f32 %v603, %v573
        %v605 = vadd.f32 %v604, %v574
        %v606 = vadd.f32 %v605, %v575
        %v607 = vadd.f32 %v606, %v576
        %v608 = vadd.f32 %v607, %v577
        %v609 = vadd.f32 %v608, %v578
        %v610 = vadd.f32 %v609, %v579
        %v611 = vadd.f32 %v610, %v580
        %v612 = vrot.slane %v611, 4
        %v613 = vadd.f32 %v611, %v612
        %v614 = vrot.slane %v613, 2
        %v615 = vadd.f32 %v613, %v614
        %v616 = vrot.slane %v615, 1
        %v617 = vadd.f32 %v615, %v616
        %v618 = vadd.f32 %v548, %v617
        %619 = vst [vmem:[#allocation6] sm:$0x1] %v618
        %s620 = sand.u32 %s75, 1
        %s621 = scalar_lea.sflag [#allocation3], %s620
        %s622 = sand.u32 %s75, 1
        %s623 = smul.addr %s622, 256
        %s624 = scalar_lea.vmem [#allocation2], %s623
        // Predicated region
        $region33: #{tpu_custom_call.1} parent=27 // pred_check
          %p625 = pneg %p85
        $region34: #{tpu_custom_call.1} parent=27 // pred_check_branch
          %627 = sbr.rel (%p625) target = $region36
        $region35: #{tpu_custom_call.1} parent=27 // pred_region
          %s628 = smul.u32 32, %s20
          %630 = vsyncadd %s621, 0
          %s631 = smul.addr %s628, 8
          %s632 = scalar_lea.hbm %s2, %s631
          %s633 = sshll.u32 %s624, 4
          %s634 = int_to_ptr.vmem [resolvable:$true] %s633
          %s635 = sshll.u32 %s632, 4
          %s636 = int_to_ptr.hbm [resolvable:$true] %s635
          %641 = dma.vmem_to_hbm [thread:$0]  %s634, 4096, %s636, %s621, 128, 128, 8
        $region36: #{tpu_custom_call.1} parent=27 // pred_fallthru
          _
        // Predicated region
        $region37: #{tpu_custom_call.1} parent=27 // pred_check
          %p642 = pneg %p106
        $region38: #{tpu_custom_call.1} parent=27 // pred_check_branch
          %644 = sbr.rel (%p642) target = $region40
        $region39: #{tpu_custom_call.1} parent=27 // pred_region
          %646 = vsyncadd [#allocation5], 0
          %s648 = sshll.u32 [#allocation4], 4
          %s649 = int_to_ptr.vmem [resolvable:$true] %s648
          %s650 = sshll.u32 %s3, 4
          %s651 = int_to_ptr.hbm [resolvable:$true] %s650
          %653 = dma.vmem_to_hbm [thread:$0]  %s649, 16, %s651, [#allocation5]
        $region40: #{tpu_custom_call.1} parent=27 // pred_fallthru
          _
        // Predicated region
        $region41: #{tpu_custom_call.1} parent=27 // pred_check
          %p654 = pneg %p127
        $region42: #{tpu_custom_call.1} parent=27 // pred_check_branch
          %656 = sbr.rel (%p654) target = $region44
        $region43: #{tpu_custom_call.1} parent=27 // pred_region
          %658 = vsyncadd [#allocation5], 0
          %s660 = sshll.u32 [#allocation6], 4
          %s661 = int_to_ptr.vmem [resolvable:$true] %s660
          %s662 = sshll.u32 %s4, 4
          %s663 = int_to_ptr.hbm [resolvable:$true] %s662
          %665 = dma.vmem_to_hbm [thread:$0]  %s661, 16, %s663, [#allocation5]
        $region44: #{tpu_custom_call.1} parent=27 // pred_fallthru
          _
        // Predicated region
        $region45: #{tpu_custom_call.1} parent=27 // pred_check
          %p666 = pneg %p106
        $region46: #{tpu_custom_call.1} parent=27 // pred_check_branch
          %668 = sbr.rel (%p666) target = $region48
        $region47: #{tpu_custom_call.1} parent=27 // pred_region
          %670 = dma.done [#allocation5], 16
        $region48: #{tpu_custom_call.1} parent=27 // pred_fallthru
          _
        // Predicated region
        $region49: #{tpu_custom_call.1} parent=27 // pred_check
          %p671 = pneg %p127
        $region50: #{tpu_custom_call.1} parent=27 // pred_check_branch
          %673 = sbr.rel (%p671) target = $region52
        $region51: #{tpu_custom_call.1} parent=27 // pred_region
          %675 = dma.done [#allocation5], 16
        $region52: #{tpu_custom_call.1} parent=27 // pred_fallthru
          _
      $region28: #{tpu_custom_call.1} parent=5 // pred_fallthru
        _
      %p676 = scmp.le.s32.totalorder 2, %s15
      // Predicated region
      $region53: #{tpu_custom_call.1} parent=5 // pred_check
        %p677 = pneg %p676
      $region54: #{tpu_custom_call.1} parent=5 // pred_check_branch
        %679 = sbr.rel (%p677) target = $region56
      $region55: #{tpu_custom_call.1} parent=5 // pred_region
        %s680 = ssub.s32 %s15, 2
        // Predicated region
        $region57: #{tpu_custom_call.1} parent=55 // pred_check
          %p681 = pneg %p91
        $region58: #{tpu_custom_call.1} parent=55 // pred_check_branch
          %683 = sbr.rel (%p681) target = $region60
        $region59: #{tpu_custom_call.1} parent=55 // pred_region
          %s684 = sand.u32 %s76, 1
          %s685 = scalar_lea.sflag [#allocation3], %s684
          %s686 = sand.u32 %s76, 1
          %s687 = smul.addr %s686, 256
          %s688 = scalar_lea.vmem [#allocation2], %s687
          %690 = dma.done %s685, 4096
        $region60: #{tpu_custom_call.1} parent=55 // pred_fallthru
          _
      $region56: #{tpu_custom_call.1} parent=5 // pred_fallthru
        _
    $region6: #{tpu_custom_call.1} parent=1 // loop_footer
      %s19 = sadd.s32 1, %s15
    $region7: #{tpu_custom_call.1} parent=1 // loop_footer_branch
      %14 = sbr.rel target = $region3
    $region8: #{tpu_custom_call.1} parent=1 // loop_exit
      _
    %691 = vsyncpa [#allocation3], 1
    %s692 = scalar_lea.sflag [#allocation3], 1
    %693 = vsyncpa %s692, 1
    %694 = vsyncpa [#allocation5], 1

</llo_original>
